<compile_context>
chip_gen: v7x
topology: tpu7x:2x2x1
jax: 0.10.0
libtpu: 0.0.40
codegen_flags: <defaults>
</compile_context>

<pallas_src>
import jax
import jax.numpy as jnp
from jax.experimental import pallas as pl
from jax.experimental.pallas import tpu as pltpu

LANE = 128
SUBLANE = 8


def _round_up(n, m):
    return ((n + m - 1) // m) * m


# ---------------------------------------------------------------------------
# Kernel
# ---------------------------------------------------------------------------
def classification_head_kernel(x_ref,
                               w1_ref, b1_ref, w2_ref, b2_ref,
                               w3_ref, b3_ref, w4_ref, b4_ref,
                               w5_ref, b5_ref,
                               o_ref):
    def dense(a, w_ref, b_ref):
        # bf16 operands feed the MXU at native width; accumulate in f32.
        w = w_ref[...]
        z = jnp.dot(a.astype(w.dtype), w, preferred_element_type=jnp.float32)
        return z + b_ref[...]          # (1, N) bias broadcasts, stays f32

    x = x_ref[...]                                        # bf16, straight to MXU
    h = jnp.maximum(dense(x, w1_ref, b1_ref), 0.0)        # Linear + ReLU
    # TODO(synk): dropout here in training mode.
    h = jnp.maximum(dense(h, w2_ref, b2_ref), 0.0)        # Linear + ReLU
    # TODO(synk): dropout here in training mode.
    h = jnp.maximum(dense(h, w3_ref, b3_ref), 0.0)        # Linear + ReLU
    h = jnp.maximum(dense(h, w4_ref, b4_ref), 0.0)        # Linear + ReLU
    z = dense(h, w5_ref, b5_ref)                          # final Linear
    # sigmoid = 1 / (1 + exp(-z)); exp and approx reciprocal both live on the
    # EUP slot, keeping the VPU free.
    sig = pl.reciprocal(1.0 + jnp.exp(-z), approx=True)
    o_ref[...] = sig.astype(o_ref.dtype)


# ---------------------------------------------------------------------------
# Wrapper
# ---------------------------------------------------------------------------
def prepare_classification_head_params(params, matmul_dtype=jnp.bfloat16):
    """Zero-pad every Linear layer to lane-multiples of 128 and cast weights
    to the MXU dtype.  Weights are stored as (in_features, out_features),
    i.e. nn.Linear.weight.T, so y = x @ W + b.  Zero padding is exact."""
    prepped = []
    for l in range(1, 6):
        w = params[f"w{l}"]
        b = params[f"b{l}"]
        K, N = w.shape
        Kp, Np = _round_up(K, LANE), _round_up(N, LANE)
        wp = jnp.zeros((Kp, Np), matmul_dtype).at[:K, :N].set(
            w.astype(matmul_dtype))
        bp = jnp.zeros((1, Np), jnp.float32).at[0, :N].set(
            b.astype(jnp.float32))
        prepped += [wp, bp]
    return prepped


def classification_head_forward(x, prepped, *, out_features, block_b=None,
                                out_dtype=jnp.float32):
    B, F = x.shape
    in_dtype = prepped[0].dtype       # MXU dtype (bf16): halves input DMA bytes
    Fp = prepped[0].shape[0]          # padded input width (= padded K of layer 1)
    Np_out = prepped[-1].shape[1]     # padded output width (>= 128, lane-dense)
    assert F <= Fp

    # Auto block size: one grid step for small batches (grid is a serial loop
    # on the single-TC v5e/v6e); 512-row MXU-filling tiles for large batches.
    # On v7x pass block_b = _round_up(B, 8) // 2 to get a 2-step "parallel"
    # grid across the two TensorCores.
    if block_b is None:
        block_b = min(512, _round_up(B, SUBLANE))
    assert block_b % SUBLANE == 0

    Bp = _round_up(B, block_b)
    n_blocks = Bp // block_b

    # Cast to the MXU dtype in the wrapper (cheap, halves the dominant HBM
    # stream); pad only if the shapes actually require it — no materialized
    # f32 padded copy.
    xk = x.astype(in_dtype)
    if (Bp, Fp) != (B, F):
        xk = jnp.pad(xk, ((0, Bp - B), (0, Fp - F)))

    in_specs = [pl.BlockSpec((block_b, Fp), lambda i: (i, 0))]
    # Weights/biases: full-array blocks, constant index map -> resident VMEM.
    in_specs += [pl.BlockSpec(p.shape, lambda i: (0, 0)) for p in prepped]

    out = pl.pallas_call(
        classification_head_kernel,
        out_shape=jax.ShapeDtypeStruct((Bp, Np_out), out_dtype),
        grid_spec=pltpu.PrefetchScalarGridSpec(
            num_scalar_prefetch=0,
            grid=(n_blocks,),
            in_specs=in_specs,
            out_specs=pl.BlockSpec((block_b, Np_out), lambda i: (i, 0)),
        ),
        compiler_params=pltpu.CompilerParams(
            dimension_semantics=("parallel",)),
    )(xk, *prepped)

    return out[:B, :out_features]


# ---------------------------------------------------------------------------
# Pure-JAX reference (PyTorch eval-mode semantics)
# ---------------------------------------------------------------------------
def classification_head_reference(x, params):
    h = jax.nn.relu(x @ params["w1"] + params["b1"])
    h = jax.nn.relu(h @ params["w2"] + params["b2"])   # dropout = identity
    h = jax.nn.relu(h @ params["w3"] + params["b3"])   # dropout = identity
    h = jax.nn.relu(h @ params["w4"] + params["b4"])
    return jax.nn.sigmoid(h @ params["w5"] + params["b5"])


# ---------------------------------------------------------------------------
if __name__ == "__main__":
    input_size = 64          # ClassificationHead(input_size)
    B = 16                   # small batch -> single grid step (block_b=16)

    # Layer widths exactly as in the PyTorch module.
    dims = [2 * input_size, 4 * input_size, input_size,
            input_size // 2, input_size // 4, 2]

    key = jax.random.PRNGKey(0)
    keys = jax.random.split(key, 11)

    params = {}
    k = 0
    for l in range(5):
        fan_in, fan_out = dims[l], dims[l + 1]
        params[f"w{l + 1}"] = (jax.random.normal(keys[k], (fan_in, fan_out),
                                                 dtype=jnp.float32)
                               / (fan_in ** 0.5))
        k += 1
        params[f"b{l + 1}"] = 0.1 * jax.random.normal(keys[k], (fan_out,),
                                                      dtype=jnp.float32)
        k += 1
    x = jax.random.normal(keys[k], (B, 2 * input_size), dtype=jnp.float32)

    prepped = prepare_classification_head_params(params)
    out = classification_head_forward(x, prepped, out_features=2)
    jax.block_until_ready(out)

    ref = classification_head_reference(x, params)
    assert out.shape == ref.shape, (out.shape, ref.shape)
    # bf16 MXU operands + approx reciprocal -> slightly looser tolerance.
    max_err = float(jnp.max(jnp.abs(out - ref)))
    assert max_err < 2e-2, f"max abs err {max_err}"

    print("KERNEL_OK")
</pallas_src>

<mosaic_0001>
module attributes {stable_mosaic.version = 11 : i64} {
  func.func @classification_head_kernel(%arg0: i32, %arg1: memref<16x128xbf16, #tpu.memory_space<vmem>>, %arg2: memref<128x256xbf16, #tpu.memory_space<vmem>>, %arg3: memref<1x256xf32, #tpu.memory_space<vmem>>, %arg4: memref<256x128xbf16, #tpu.memory_space<vmem>>, %arg5: memref<1x128xf32, #tpu.memory_space<vmem>>, %arg6: memref<128x128xbf16, #tpu.memory_space<vmem>>, %arg7: memref<1x128xf32, #tpu.memory_space<vmem>>, %arg8: memref<128x128xbf16, #tpu.memory_space<vmem>>, %arg9: memref<1x128xf32, #tpu.memory_space<vmem>>, %arg10: memref<128x128xbf16, #tpu.memory_space<vmem>>, %arg11: memref<1x128xf32, #tpu.memory_space<vmem>>, %arg12: memref<16x128xf32, #tpu.memory_space<vmem>>) attributes {dimension_semantics = [#tpu.dimension_semantics<parallel>], iteration_bounds = array<i64: 1>, scalar_prefetch = 0 : i64, scratch_operands = 0 : i64, tpu.core_type = #tpu.core_type<tc>, window_params = [{transform_indices = @transform_0, window_bounds = array<i64: 16, 128>}, {pipeline_mode = #tpu.pipeline_mode<synchronous>, transform_indices = @transform_1, window_bounds = array<i64: 128, 256>}, {pipeline_mode = #tpu.pipeline_mode<synchronous>, transform_indices = @transform_2, window_bounds = array<i64: 1, 256>}, {pipeline_mode = #tpu.pipeline_mode<synchronous>, transform_indices = @transform_3, window_bounds = array<i64: 256, 128>}, {pipeline_mode = #tpu.pipeline_mode<synchronous>, transform_indices = @transform_4, window_bounds = array<i64: 1, 128>}, {pipeline_mode = #tpu.pipeline_mode<synchronous>, transform_indices = @transform_5, window_bounds = array<i64: 128, 128>}, {pipeline_mode = #tpu.pipeline_mode<synchronous>, transform_indices = @transform_6, window_bounds = array<i64: 1, 128>}, {pipeline_mode = #tpu.pipeline_mode<synchronous>, transform_indices = @transform_7, window_bounds = array<i64: 128, 128>}, {pipeline_mode = #tpu.pipeline_mode<synchronous>, transform_indices = @transform_8, window_bounds = array<i64: 1, 128>}, {pipeline_mode = #tpu.pipeline_mode<synchronous>, transform_indices = @transform_9, window_bounds = array<i64: 128, 128>}, {pipeline_mode = #tpu.pipeline_mode<synchronous>, transform_indices = @transform_10, window_bounds = array<i64: 1, 128>}, {transform_indices = @transform_11, window_bounds = array<i64: 16, 128>}]} {
    %c0 = arith.constant 0 : index
    %c0_0 = arith.constant 0 : index
    %0 = vector.load %arg1[%c0, %c0_0] : memref<16x128xbf16, #tpu.memory_space<vmem>>, vector<16x128xbf16>
    %c0_1 = arith.constant 0 : index
    %c0_2 = arith.constant 0 : index
    %1 = vector.load %arg2[%c0_1, %c0_2] : memref<128x256xbf16, #tpu.memory_space<vmem>>, vector<128x256xbf16>
    %cst = arith.constant dense<0.000000e+00> : vector<16x256xf32>
    %2 = tpu.matmul %0, %1, %cst {dimension_numbers = #tpu.dot_dimension_numbers<[1], [0], [0], [1], [0, 0, 1, 1], [], []>} : vector<16x128xbf16>, vector<128x256xbf16>, vector<16x256xf32> -> vector<16x256xf32>
    %c0_3 = arith.constant 0 : index
    %c0_4 = arith.constant 0 : index
    %3 = vector.load %arg3[%c0_3, %c0_4] : memref<1x256xf32, #tpu.memory_space<vmem>>, vector<1x256xf32>
    %4 = vector.broadcast %3 : vector<1x256xf32> to vector<16x256xf32>
    %5 = arith.addf %2, %4 : vector<16x256xf32>
    %cst_5 = arith.constant 0.000000e+00 : f32
    %6 = vector.broadcast %cst_5 : f32 to vector<16x256xf32>
    %7 = arith.maximumf %5, %6 : vector<16x256xf32>
    %c0_6 = arith.constant 0 : index
    %c0_7 = arith.constant 0 : index
    %8 = vector.load %arg4[%c0_6, %c0_7] : memref<256x128xbf16, #tpu.memory_space<vmem>>, vector<256x128xbf16>
    %9 = arith.truncf %7 : vector<16x256xf32> to vector<16x256xbf16>
    %cst_8 = arith.constant dense<0.000000e+00> : vector<16x128xf32>
    %10 = tpu.matmul %9, %8, %cst_8 {dimension_numbers = #tpu.dot_dimension_numbers<[1], [0], [0], [1], [0, 0, 1, 1], [], []>} : vector<16x256xbf16>, vector<256x128xbf16>, vector<16x128xf32> -> vector<16x128xf32>
    %c0_9 = arith.constant 0 : index
    %c0_10 = arith.constant 0 : index
    %11 = vector.load %arg5[%c0_9, %c0_10] : memref<1x128xf32, #tpu.memory_space<vmem>>, vector<1x128xf32>
    %12 = vector.broadcast %11 : vector<1x128xf32> to vector<16x128xf32>
    %13 = arith.addf %10, %12 : vector<16x128xf32>
    %cst_11 = arith.constant 0.000000e+00 : f32
    %14 = vector.broadcast %cst_11 : f32 to vector<16x128xf32>
    %15 = arith.maximumf %13, %14 : vector<16x128xf32>
    %c0_12 = arith.constant 0 : index
    %c0_13 = arith.constant 0 : index
    %16 = vector.load %arg6[%c0_12, %c0_13] : memref<128x128xbf16, #tpu.memory_space<vmem>>, vector<128x128xbf16>
    %17 = arith.truncf %15 : vector<16x128xf32> to vector<16x128xbf16>
    %cst_14 = arith.constant dense<0.000000e+00> : vector<16x128xf32>
    %18 = tpu.matmul %17, %16, %cst_14 {dimension_numbers = #tpu.dot_dimension_numbers<[1], [0], [0], [1], [0, 0, 1, 1], [], []>} : vector<16x128xbf16>, vector<128x128xbf16>, vector<16x128xf32> -> vector<16x128xf32>
    %c0_15 = arith.constant 0 : index
    %c0_16 = arith.constant 0 : index
    %19 = vector.load %arg7[%c0_15, %c0_16] : memref<1x128xf32, #tpu.memory_space<vmem>>, vector<1x128xf32>
    %20 = vector.broadcast %19 : vector<1x128xf32> to vector<16x128xf32>
    %21 = arith.addf %18, %20 : vector<16x128xf32>
    %cst_17 = arith.constant 0.000000e+00 : f32
    %22 = vector.broadcast %cst_17 : f32 to vector<16x128xf32>
    %23 = arith.maximumf %21, %22 : vector<16x128xf32>
    %c0_18 = arith.constant 0 : index
    %c0_19 = arith.constant 0 : index
    %24 = vector.load %arg8[%c0_18, %c0_19] : memref<128x128xbf16, #tpu.memory_space<vmem>>, vector<128x128xbf16>
    %25 = arith.truncf %23 : vector<16x128xf32> to vector<16x128xbf16>
    %cst_20 = arith.constant dense<0.000000e+00> : vector<16x128xf32>
    %26 = tpu.matmul %25, %24, %cst_20 {dimension_numbers = #tpu.dot_dimension_numbers<[1], [0], [0], [1], [0, 0, 1, 1], [], []>} : vector<16x128xbf16>, vector<128x128xbf16>, vector<16x128xf32> -> vector<16x128xf32>
    %c0_21 = arith.constant 0 : index
    %c0_22 = arith.constant 0 : index
    %27 = vector.load %arg9[%c0_21, %c0_22] : memref<1x128xf32, #tpu.memory_space<vmem>>, vector<1x128xf32>
    %28 = vector.broadcast %27 : vector<1x128xf32> to vector<16x128xf32>
    %29 = arith.addf %26, %28 : vector<16x128xf32>
    %cst_23 = arith.constant 0.000000e+00 : f32
    %30 = vector.broadcast %cst_23 : f32 to vector<16x128xf32>
    %31 = arith.maximumf %29, %30 : vector<16x128xf32>
    %c0_24 = arith.constant 0 : index
    %c0_25 = arith.constant 0 : index
    %32 = vector.load %arg10[%c0_24, %c0_25] : memref<128x128xbf16, #tpu.memory_space<vmem>>, vector<128x128xbf16>
    %33 = arith.truncf %31 : vector<16x128xf32> to vector<16x128xbf16>
    %cst_26 = arith.constant dense<0.000000e+00> : vector<16x128xf32>
    %34 = tpu.matmul %33, %32, %cst_26 {dimension_numbers = #tpu.dot_dimension_numbers<[1], [0], [0], [1], [0, 0, 1, 1], [], []>} : vector<16x128xbf16>, vector<128x128xbf16>, vector<16x128xf32> -> vector<16x128xf32>
    %c0_27 = arith.constant 0 : index
    %c0_28 = arith.constant 0 : index
    %35 = vector.load %arg11[%c0_27, %c0_28] : memref<1x128xf32, #tpu.memory_space<vmem>>, vector<1x128xf32>
    %36 = vector.broadcast %35 : vector<1x128xf32> to vector<16x128xf32>
    %37 = arith.addf %34, %36 : vector<16x128xf32>
    %cst_29 = arith.constant 0.000000e+00 : f32
    %38 = vector.broadcast %cst_29 : f32 to vector<16x128xf32>
    %39 = arith.subf %38, %37 : vector<16x128xf32>
    %40 = math.exp %39 : vector<16x128xf32>
    %cst_30 = arith.constant 1.000000e+00 : f32
    %41 = vector.broadcast %cst_30 : f32 to vector<16x128xf32>
    %42 = arith.addf %41, %40 : vector<16x128xf32>
    %43 = tpu.reciprocal %42 {approx = true} : vector<16x128xf32> -> vector<16x128xf32>
    %c0_31 = arith.constant 0 : index
    %c0_32 = arith.constant 0 : index
    %44 = vector.load %arg12[%c0_31, %c0_32] : memref<16x128xf32, #tpu.memory_space<vmem>>, vector<16x128xf32>
    tpu.vector_store %arg12[%c0_31, %c0_32], %43 {strides = array<i32>} : memref<16x128xf32, #tpu.memory_space<vmem>>, vector<16x128xf32>,
    return
  }
  func.func @transform_0(%arg0: i32) -> (i32, i32) {
    %c0_i32 = arith.constant 0 : i32
    %c0_i32_0 = arith.constant 0 : i32
    return %arg0, %c0_i32 : i32, i32
  }
  func.func @transform_1(%arg0: i32) -> (i32, i32) {
    %c0_i32 = arith.constant 0 : i32
    %c0_i32_0 = arith.constant 0 : i32
    %c0_i32_1 = arith.constant 0 : i32
    return %c0_i32, %c0_i32_0 : i32, i32
  }
  func.func @transform_2(%arg0: i32) -> (i32, i32) {
    %c0_i32 = arith.constant 0 : i32
    %c0_i32_0 = arith.constant 0 : i32
    %c0_i32_1 = arith.constant 0 : i32
    return %c0_i32, %c0_i32_0 : i32, i32
  }
  func.func @transform_3(%arg0: i32) -> (i32, i32) {
    %c0_i32 = arith.constant 0 : i32
    %c0_i32_0 = arith.constant 0 : i32
    %c0_i32_1 = arith.constant 0 : i32
    return %c0_i32, %c0_i32_0 : i32, i32
  }
  func.func @transform_4(%arg0: i32) -> (i32, i32) {
    %c0_i32 = arith.constant 0 : i32
    %c0_i32_0 = arith.constant 0 : i32
    %c0_i32_1 = arith.constant 0 : i32
    return %c0_i32, %c0_i32_0 : i32, i32
  }
  func.func @transform_5(%arg0: i32) -> (i32, i32) {
    %c0_i32 = arith.constant 0 : i32
    %c0_i32_0 = arith.constant 0 : i32
    %c0_i32_1 = arith.constant 0 : i32
    return %c0_i32, %c0_i32_0 : i32, i32
  }
  func.func @transform_6(%arg0: i32) -> (i32, i32) {
    %c0_i32 = arith.constant 0 : i32
    %c0_i32_0 = arith.constant 0 : i32
    %c0_i32_1 = arith.constant 0 : i32
    return %c0_i32, %c0_i32_0 : i32, i32
  }
  func.func @transform_7(%arg0: i32) -> (i32, i32) {
    %c0_i32 = arith.constant 0 : i32
    %c0_i32_0 = arith.constant 0 : i32
    %c0_i32_1 = arith.constant 0 : i32
    return %c0_i32, %c0_i32_0 : i32, i32
  }
  func.func @transform_8(%arg0: i32) -> (i32, i32) {
    %c0_i32 = arith.constant 0 : i32
    %c0_i32_0 = arith.constant 0 : i32
    %c0_i32_1 = arith.constant 0 : i32
    return %c0_i32, %c0_i32_0 : i32, i32
  }
  func.func @transform_9(%arg0: i32) -> (i32, i32) {
    %c0_i32 = arith.constant 0 : i32
    %c0_i32_0 = arith.constant 0 : i32
    %c0_i32_1 = arith.constant 0 : i32
    return %c0_i32, %c0_i32_0 : i32, i32
  }
  func.func @transform_10(%arg0: i32) -> (i32, i32) {
    %c0_i32 = arith.constant 0 : i32
    %c0_i32_0 = arith.constant 0 : i32
    %c0_i32_1 = arith.constant 0 : i32
    return %c0_i32, %c0_i32_0 : i32, i32
  }
  func.func @transform_11(%arg0: i32) -> (i32, i32) {
    %c0_i32 = arith.constant 0 : i32
    %c0_i32_0 = arith.constant 0 : i32
    return %arg0, %c0_i32 : i32, i32
  }
}

</mosaic_0001>

<llo_original>
// kernel: tpu_custom_call.1
$region0: #{tpu_custom_call.1}
  #allocation0 [shape = 'u32[]', space=smem, size = 0x4, offset = 0x4, fixed_abs, tag = 'smem constant byte address 0x4 - core index']
  #allocation1 [shape = 'u32[144,128]{1,0:T(1,128)}', space=vmem, size = 0x12000, scoped, tag = 'internal scratch']
  %s0 = inlined_call_operand.hbm [shape: bf16[16,128], index: 0, kind: input, shape index: {}]
  %s1 = inlined_call_operand.hbm [shape: bf16[128,256], index: 1, kind: input, shape index: {}]
  %s2 = inlined_call_operand.vmem [shape: f32[1,256], index: 2, kind: input, shape index: {}]
  %s3 = inlined_call_operand.hbm [shape: bf16[256,128], index: 3, kind: input, shape index: {}]
  %s4 = inlined_call_operand.vmem [shape: f32[1,128], index: 4, kind: input, shape index: {}]
  %s5 = inlined_call_operand.hbm [shape: bf16[128,128], index: 5, kind: input, shape index: {}]
  %s6 = inlined_call_operand.vmem [shape: f32[1,128], index: 6, kind: input, shape index: {}]
  %s7 = inlined_call_operand.hbm [shape: bf16[128,128], index: 7, kind: input, shape index: {}]
  %s8 = inlined_call_operand.vmem [shape: f32[1,128], index: 8, kind: input, shape index: {}]
  %s9 = inlined_call_operand.hbm [shape: bf16[128,128], index: 9, kind: input, shape index: {}]
  %s10 = inlined_call_operand.vmem [shape: f32[1,128], index: 10, kind: input, shape index: {}]
  %s11 = inlined_call_operand.hbm [shape: f32[16,128], index: 11, kind: output, shape index: {}]
  %s12 = sld [smem:[#allocation0]]
  $region78: #{tpu_custom_call.1} parent=0
    _
  %s14 = ssub.s32 1, %s12
  %s15 = scalar_select 0, %s14, %s12
  $region1: #{tpu_custom_call.1} parent=0
    #allocation2 [shape = 'u8[4096]{0}', space=vmem, size = 0x1000, scoped, tag = 'input window, operand 0, single buffered']
    #allocation3 [shape = 's32[1]{0}', space=sflag, size = 0x4, scoped, tag = 'scoped memory for tpu_custom_call.1']
    #allocation4 [shape = 's32[1]{0}', space=sflag, size = 0x4, scoped, tag = 'scoped memory for tpu_custom_call.1']
    #allocation5 [shape = 'u8[65536]{0}', space=vmem, size = 0x10000, scoped, tag = 'input window, operand 1, single buffered']
    #allocation6 [shape = 's32[1]{0}', space=sflag, size = 0x4, scoped, tag = 'scoped memory for tpu_custom_call.1']
    #allocation7 [shape = 'u8[65536]{0}', space=vmem, size = 0x10000, scoped, tag = 'input window, operand 3, single buffered']
    #allocation8 [shape = 'u8[32768]{0}', space=vmem, size = 0x8000, scoped, tag = 'input window, operand 5, single buffered']
    #allocation9 [shape = 's32[1]{0}', space=sflag, size = 0x4, scoped, tag = 'scoped memory for tpu_custom_call.1']
    #allocation10 [shape = 'u8[32768]{0}', space=vmem, size = 0x8000, scoped, tag = 'input window, operand 7, single buffered']
    #allocation11 [shape = 'u8[32768]{0}', space=vmem, size = 0x8000, scoped, tag = 'input window, operand 9, single buffered']
    #allocation12 [shape = 's32[1]{0}', space=sflag, size = 0x4, scoped, tag = 'scoped memory for tpu_custom_call.1']
    #allocation13 [shape = 'u8[8192]{0}', space=vmem, size = 0x2000, scoped, tag = 'output window, operand 0, single buffered']
    %16 = vsyncpa [#allocation3], 0
    %17 = vsyncpa [#allocation6], 0
    %18 = vsyncpa [#allocation9], 0
    %19 = vsyncpa [#allocation12], 0
    %20 = vsyncpa [#allocation4], 0
    // Predicated region
    $region2: #{tpu_custom_call.1} parent=1 // pred_check
      _
    $region3: #{tpu_custom_call.1} parent=1 // pred_check_branch
      %22 = sbr.rel (0) target = $region5
    $region4: #{tpu_custom_call.1} parent=1 // pred_region
      %s24 = ssub.s32 128, 128
      %25 = vsyncadd [#allocation3], %s24
      %s26 = sshll.u32 [#allocation2], 4
      %s27 = int_to_ptr.vmem [resolvable:$true] %s26
      %32 = dma.hbm_to_vmem [thread:$0]  %s0, 128, %s27, [#allocation3], 64, 64, 4
    $region5: #{tpu_custom_call.1} parent=1 // pred_fallthru
      _
    // Predicated region
    $region6: #{tpu_custom_call.1} parent=1 // pred_check
      _
    $region7: #{tpu_custom_call.1} parent=1 // pred_check_branch
      %34 = sbr.rel (0) target = $region9
    $region8: #{tpu_custom_call.1} parent=1 // pred_region
      %s36 = ssub.s32 2048, 2048
      %37 = vsyncadd [#allocation6], %s36
      %s38 = sshll.u32 [#allocation5], 4
      %s39 = int_to_ptr.vmem [resolvable:$true] %s38
      %44 = dma.hbm_to_vmem [thread:$0]  %s1, 2048, %s39, [#allocation6], 128, 128, 8
    $region9: #{tpu_custom_call.1} parent=1 // pred_fallthru
      _
    // Predicated region
    $region10: #{tpu_custom_call.1} parent=1 // pred_check
      _
    $region11: #{tpu_custom_call.1} parent=1 // pred_check_branch
      %46 = sbr.rel (0) target = $region13
    $region12: #{tpu_custom_call.1} parent=1 // pred_region
      _
    $region13: #{tpu_custom_call.1} parent=1 // pred_fallthru
      _
    // Predicated region
    $region14: #{tpu_custom_call.1} parent=1 // pred_check
      _
    $region15: #{tpu_custom_call.1} parent=1 // pred_check_branch
      %48 = sbr.rel (0) target = $region17
    $region16: #{tpu_custom_call.1} parent=1 // pred_region
      %s50 = ssub.s32 2048, 2048
      %51 = vsyncadd [#allocation6], %s50
      %s52 = sshll.u32 [#allocation7], 4
      %s53 = int_to_ptr.vmem [resolvable:$true] %s52
      %58 = dma.hbm_to_vmem [thread:$0]  %s3, 2048, %s53, [#allocation6], 64, 64, 4
    $region17: #{tpu_custom_call.1} parent=1 // pred_fallthru
      _
    // Predicated region
    $region18: #{tpu_custom_call.1} parent=1 // pred_check
      _
    $region19: #{tpu_custom_call.1} parent=1 // pred_check_branch
      %60 = sbr.rel (0) target = $region21
    $region20: #{tpu_custom_call.1} parent=1 // pred_region
      _
    $region21: #{tpu_custom_call.1} parent=1 // pred_fallthru
      _
    // Predicated region
    $region22: #{tpu_custom_call.1} parent=1 // pred_check
      _
    $region23: #{tpu_custom_call.1} parent=1 // pred_check_branch
      %62 = sbr.rel (0) target = $region25
    $region24: #{tpu_custom_call.1} parent=1 // pred_region
      %s64 = ssub.s32 1024, 1024
      %65 = vsyncadd [#allocation9], %s64
      %s66 = sshll.u32 [#allocation8], 4
      %s67 = int_to_ptr.vmem [resolvable:$true] %s66
      %72 = dma.hbm_to_vmem [thread:$0]  %s5, 1024, %s67, [#allocation9], 64, 64, 4
    $region25: #{tpu_custom_call.1} parent=1 // pred_fallthru
      _
    // Predicated region
    $region26: #{tpu_custom_call.1} parent=1 // pred_check
      _
    $region27: #{tpu_custom_call.1} parent=1 // pred_check_branch
      %74 = sbr.rel (0) target = $region29
    $region28: #{tpu_custom_call.1} parent=1 // pred_region
      _
    $region29: #{tpu_custom_call.1} parent=1 // pred_fallthru
      _
    // Predicated region
    $region30: #{tpu_custom_call.1} parent=1 // pred_check
      _
    $region31: #{tpu_custom_call.1} parent=1 // pred_check_branch
      %76 = sbr.rel (0) target = $region33
    $region32: #{tpu_custom_call.1} parent=1 // pred_region
      %s78 = ssub.s32 1024, 1024
      %79 = vsyncadd [#allocation9], %s78
      %s80 = sshll.u32 [#allocation10], 4
      %s81 = int_to_ptr.vmem [resolvable:$true] %s80
      %86 = dma.hbm_to_vmem [thread:$0]  %s7, 1024, %s81, [#allocation9], 64, 64, 4
    $region33: #{tpu_custom_call.1} parent=1 // pred_fallthru
      _
    // Predicated region
    $region34: #{tpu_custom_call.1} parent=1 // pred_check
      _
    $region35: #{tpu_custom_call.1} parent=1 // pred_check_branch
      %88 = sbr.rel (0) target = $region37
    $region36: #{tpu_custom_call.1} parent=1 // pred_region
      _
    $region37: #{tpu_custom_call.1} parent=1 // pred_fallthru
      _
    // Predicated region
    $region38: #{tpu_custom_call.1} parent=1 // pred_check
      _
    $region39: #{tpu_custom_call.1} parent=1 // pred_check_branch
      %90 = sbr.rel (0) target = $region41
    $region40: #{tpu_custom_call.1} parent=1 // pred_region
      %s92 = ssub.s32 1024, 1024
      %93 = vsyncadd [#allocation12], %s92
      %s94 = sshll.u32 [#allocation11], 4
      %s95 = int_to_ptr.vmem [resolvable:$true] %s94
      %100 = dma.hbm_to_vmem [thread:$0]  %s9, 1024, %s95, [#allocation12], 64, 64, 4
    $region41: #{tpu_custom_call.1} parent=1 // pred_fallthru
      _
    // Predicated region
    $region42: #{tpu_custom_call.1} parent=1 // pred_check
      _
    $region43: #{tpu_custom_call.1} parent=1 // pred_check_branch
      %102 = sbr.rel (0) target = $region45
    $region44: #{tpu_custom_call.1} parent=1 // pred_region
      _
    $region45: #{tpu_custom_call.1} parent=1 // pred_fallthru
      _
    // Predicated region
    $region46: #{tpu_custom_call.1} parent=1 // pred_check
      _
    $region47: #{tpu_custom_call.1} parent=1 // pred_check_branch
      %104 = sbr.rel (0) target = $region49
    $region48: #{tpu_custom_call.1} parent=1 // pred_region
      %105 = dma.done [#allocation3], 128
    $region49: #{tpu_custom_call.1} parent=1 // pred_fallthru
      _
    // Predicated region
    $region50: #{tpu_custom_call.1} parent=1 // pred_check
      _
    $region51: #{tpu_custom_call.1} parent=1 // pred_check_branch
      %107 = sbr.rel (0) target = $region53
    $region52: #{tpu_custom_call.1} parent=1 // pred_region
      %108 = dma.done [#allocation6], 2048
    $region53: #{tpu_custom_call.1} parent=1 // pred_fallthru
      _
    // Predicated region
    $region54: #{tpu_custom_call.1} parent=1 // pred_check
      _
    $region55: #{tpu_custom_call.1} parent=1 // pred_check_branch
      %110 = sbr.rel (0) target = $region57
    $region56: #{tpu_custom_call.1} parent=1 // pred_region
      %111 = dma.done [#allocation6], 2048
    $region57: #{tpu_custom_call.1} parent=1 // pred_fallthru
      _
    // Predicated region
    $region58: #{tpu_custom_call.1} parent=1 // pred_check
      _
    $region59: #{tpu_custom_call.1} parent=1 // pred_check_branch
      %113 = sbr.rel (0) target = $region61
    $region60: #{tpu_custom_call.1} parent=1 // pred_region
      %114 = dma.done [#allocation9], 1024
    $region61: #{tpu_custom_call.1} parent=1 // pred_fallthru
      _
    // Predicated region
    $region62: #{tpu_custom_call.1} parent=1 // pred_check
      _
    $region63: #{tpu_custom_call.1} parent=1 // pred_check_branch
      %116 = sbr.rel (0) target = $region65
    $region64: #{tpu_custom_call.1} parent=1 // pred_region
      %117 = dma.done [#allocation9], 1024
    $region65: #{tpu_custom_call.1} parent=1 // pred_fallthru
      _
    // Predicated region
    $region66: #{tpu_custom_call.1} parent=1 // pred_check
      _
    $region67: #{tpu_custom_call.1} parent=1 // pred_check_branch
      %119 = sbr.rel (0) target = $region69
    $region68: #{tpu_custom_call.1} parent=1 // pred_region
      %120 = dma.done [#allocation12], 1024
    $region69: #{tpu_custom_call.1} parent=1 // pred_fallthru
      _
    %v122 = vld [vmem:[#allocation2] sm:$0xf]
    %v123 = vld [vmem:[#allocation2 + $0x4] sm:$0xf]
    %v124 = vld [vmem:[#allocation5] sm:$0xff]
    %v125 = vld [vmem:[#allocation5 + $0x8] sm:$0xff]
    %v126 = vld [vmem:[#allocation5 + $0x10] sm:$0xff]
    %v127 = vld [vmem:[#allocation5 + $0x18] sm:$0xff]
    %v128 = vld [vmem:[#allocation5 + $0x20] sm:$0xff]
    %v129 = vld [vmem:[#allocation5 + $0x28] sm:$0xff]
    %v130 = vld [vmem:[#allocation5 + $0x30] sm:$0xff]
    %v131 = vld [vmem:[#allocation5 + $0x38] sm:$0xff]
    %v132 = vld [vmem:[#allocation5 + $0x40] sm:$0xff]
    %v133 = vld [vmem:[#allocation5 + $0x48] sm:$0xff]
    %v134 = vld [vmem:[#allocation5 + $0x50] sm:$0xff]
    %v135 = vld [vmem:[#allocation5 + $0x58] sm:$0xff]
    %v136 = vld [vmem:[#allocation5 + $0x60] sm:$0xff]
    %v137 = vld [vmem:[#allocation5 + $0x68] sm:$0xff]
    %v138 = vld [vmem:[#allocation5 + $0x70] sm:$0xff]
    %v139 = vld [vmem:[#allocation5 + $0x78] sm:$0xff]
    %v140 = vld [vmem:[%s2] sm:$0x3]
    %v142 = vlaneseq
    %v143 = vshrl.u32 %v142, 7
    %v144 = vsub.s32 0, %v143
    %v145 = vrot.slane %v140, %v144
    %v146 = vlaneseq
    %v147 = vshrl.u32 %v146, 7
    %v148 = vsub.s32 1, %v147
    %v149 = vrot.slane %v140, %v148
    %v154 = vunpack.c.l.b16 %v122
    %v155 = vunpack.c.l.b16 %v123
    %v156 = vpack.c.b16 %v155, %v154
    %v174 = vunpack.c.l.b16 %v124
    %v175 = vunpack.c.h.b16 %v124
    %v176 = vunpack.c.l.b16 %v125
    %v177 = vunpack.c.h.b16 %v125
    %v178 = vunpack.c.l.b16 %v126
    %v179 = vunpack.c.h.b16 %v126
    %v180 = vunpack.c.l.b16 %v127
    %v181 = vunpack.c.h.b16 %v127
    %v182 = vunpack.c.l.b16 %v128
    %v183 = vunpack.c.h.b16 %v128
    %v184 = vunpack.c.l.b16 %v129
    %v185 = vunpack.c.h.b16 %v129
    %v186 = vunpack.c.l.b16 %v130
    %v187 = vunpack.c.h.b16 %v130
    %v188 = vunpack.c.l.b16 %v131
    %v189 = vunpack.c.h.b16 %v131
    %v190 = vunpack.c.l.b16 %v132
    %v191 = vunpack.c.h.b16 %v132
    %v192 = vunpack.c.l.b16 %v133
    %v193 = vunpack.c.h.b16 %v133
    %v194 = vunpack.c.l.b16 %v134
    %v195 = vunpack.c.h.b16 %v134
    %v196 = vunpack.c.l.b16 %v135
    %v197 = vunpack.c.h.b16 %v135
    %v198 = vunpack.c.l.b16 %v136
    %v199 = vunpack.c.h.b16 %v136
    %v200 = vunpack.c.l.b16 %v137
    %v201 = vunpack.c.h.b16 %v137
    %v202 = vunpack.c.l.b16 %v138
    %v203 = vunpack.c.h.b16 %v138
    %v204 = vunpack.c.l.b16 %v139
    %v205 = vunpack.c.h.b16 %v139
    %v206 = vpack.c.b16 %v176, %v174
    %v207 = vpack.c.b16 %v177, %v175
    %v208 = vpack.c.b16 %v180, %v178
    %v209 = vpack.c.b16 %v181, %v179
    %v210 = vpack.c.b16 %v184, %v182
    %v211 = vpack.c.b16 %v185, %v183
    %v212 = vpack.c.b16 %v188, %v186
    %v213 = vpack.c.b16 %v189, %v187
    %v214 = vpack.c.b16 %v192, %v190
    %v215 = vpack.c.b16 %v193, %v191
    %v216 = vpack.c.b16 %v196, %v194
    %v217 = vpack.c.b16 %v197, %v195
    %v218 = vpack.c.b16 %v200, %v198
    %v219 = vpack.c.b16 %v201, %v199
    %v220 = vpack.c.b16 %v204, %v202
    %v221 = vpack.c.b16 %v205, %v203
    %238 = vmatprep.subr.bf16.mxu0 %v207
    %239 = vmatpush1.bf16.msra.mxu0 %v206
    %240 = vmatprep.subr.bf16.mxu0 %v209
    %241 = vmatpush1.bf16.msra.mxu0 %v208
    %242 = vmatprep.subr.bf16.mxu0 %v211
    %243 = vmatpush1.bf16.msra.mxu0 %v210
    %244 = vmatprep.subr.bf16.mxu0 %v213
    %245 = vmatpush1.bf16.msra.mxu0 %v212
    %246 = vmatprep.subr.bf16.mxu0 %v215
    %247 = vmatpush1.bf16.msra.mxu0 %v214
    %248 = vmatprep.subr.bf16.mxu0 %v217
    %249 = vmatpush1.bf16.msra.mxu0 %v216
    %250 = vmatprep.subr.bf16.mxu0 %v219
    %251 = vmatpush1.bf16.msra.mxu0 %v218
    %252 = vmatprep.subr.bf16.mxu0 %v221
    %253 = vmatpush1.bf16.msra.mxu0 %v220
    %254 = vmatprep.subr.bf16.mxu0 0
    %255 = vmatpush1.bf16.msra.mxu0 0
    %256 = vmatprep.subr.bf16.mxu0 0
    %257 = vmatpush1.bf16.msra.mxu0 0
    %258 = vmatprep.subr.bf16.mxu0 0
    %259 = vmatpush1.bf16.msra.mxu0 0
    %260 = vmatprep.subr.bf16.mxu0 0
    %261 = vmatpush1.bf16.msra.mxu0 0
    %262 = vmatprep.subr.bf16.mxu0 0
    %263 = vmatpush1.bf16.msra.mxu0 0
    %264 = vmatprep.subr.bf16.mxu0 0
    %265 = vmatpush1.bf16.msra.mxu0 0
    %266 = vmatprep.subr.bf16.mxu0 0
    %267 = vmatpush1.bf16.msra.mxu0 0
    %268 = vmatprep.subr.bf16.mxu0 0
    %269 = vmatpush1.bf16.msra.mxu0 0
    %270 = vmatprep.mubr.bf16.mxu0 0
    %271 = vmatmul.mubr.bf16.gmra.mrb[0].mxu0 %v156
    %v272 = vpop.f32.mrb[0].mxu0
    %v273 = vadd.f32 %v145, %v272
    %v274 = vpop.f32.mrb[0].mxu0
    %v275 = vadd.f32 %v149, %v274
    %v276 = vpop.f32.mrb[0].mxu0
    %v277 = vadd.f32 %v145, %v276
    %v278 = vpop.f32.mrb[0].mxu0
    %v279 = vadd.f32 %v149, %v278
    %280 = vdwg.mxu0
    %v281 = vmax.f32 %v273, 0.0
    %v282 = vmax.f32 %v275, 0.0
    %v283 = vmax.f32 %v277, 0.0
    %v284 = vmax.f32 %v279, 0.0
    %v285 = vld [vmem:[#allocation7] sm:$0xf]
    %v286 = vld [vmem:[#allocation7 + $0x4] sm:$0xf]
    %v287 = vld [vmem:[#allocation7 + $0x8] sm:$0xf]
    %v288 = vld [vmem:[#allocation7 + $0xc] sm:$0xf]
    %v289 = vld [vmem:[#allocation7 + $0x10] sm:$0xf]
    %v290 = vld [vmem:[#allocation7 + $0x14] sm:$0xf]
    %v291 = vld [vmem:[#allocation7 + $0x18] sm:$0xf]
    %v292 = vld [vmem:[#allocation7 + $0x1c] sm:$0xf]
    %v293 = vld [vmem:[#allocation7 + $0x20] sm:$0xf]
    %v294 = vld [vmem:[#allocation7 + $0x24] sm:$0xf]
    %v295 = vld [vmem:[#allocation7 + $0x28] sm:$0xf]
    %v296 = vld [vmem:[#allocation7 + $0x2c] sm:$0xf]
    %v297 = vld [vmem:[#allocation7 + $0x30] sm:$0xf]
    %v298 = vld [vmem:[#allocation7 + $0x34] sm:$0xf]
    %v299 = vld [vmem:[#allocation7 + $0x38] sm:$0xf]
    %v300 = vld [vmem:[#allocation7 + $0x3c] sm:$0xf]
    %v301 = vld [vmem:[#allocation7 + $0x40] sm:$0xf]
    %v302 = vld [vmem:[#allocation7 + $0x44] sm:$0xf]
    %v303 = vld [vmem:[#allocation7 + $0x48] sm:$0xf]
    %v304 = vld [vmem:[#allocation7 + $0x4c] sm:$0xf]
    %v305 = vld [vmem:[#allocation7 + $0x50] sm:$0xf]
    %v306 = vld [vmem:[#allocation7 + $0x54] sm:$0xf]
    %v307 = vld [vmem:[#allocation7 + $0x58] sm:$0xf]
    %v308 = vld [vmem:[#allocation7 + $0x5c] sm:$0xf]
    %v309 = vld [vmem:[#allocation7 + $0x60] sm:$0xf]
    %v310 = vld [vmem:[#allocation7 + $0x64] sm:$0xf]
    %v311 = vld [vmem:[#allocation7 + $0x68] sm:$0xf]
    %v312 = vld [vmem:[#allocation7 + $0x6c] sm:$0xf]
    %v313 = vld [vmem:[#allocation7 + $0x70] sm:$0xf]
    %v314 = vld [vmem:[#allocation7 + $0x74] sm:$0xf]
    %v315 = vld [vmem:[#allocation7 + $0x78] sm:$0xf]
    %v316 = vld [vmem:[#allocation7 + $0x7c] sm:$0xf]
    %v317 = vpack.c.bf16 %v283, %v281
    %v318 = vpack.c.bf16 %v284, %v282
    %v319 = vld [vmem:[%s4] sm:$0x1]
    %v321 = vlaneseq
    %v322 = vshrl.u32 %v321, 7
    %v323 = vsub.s32 0, %v322
    %v324 = vrot.slane %v319, %v323
    %v358 = vunpack.c.l.b16 %v285
    %v359 = vunpack.c.l.b16 %v286
    %v360 = vunpack.c.l.b16 %v287
    %v361 = vunpack.c.l.b16 %v288
    %v362 = vunpack.c.l.b16 %v289
    %v363 = vunpack.c.l.b16 %v290
    %v364 = vunpack.c.l.b16 %v291
    %v365 = vunpack.c.l.b16 %v292
    %v366 = vunpack.c.l.b16 %v293
    %v367 = vunpack.c.l.b16 %v294
    %v368 = vunpack.c.l.b16 %v295
    %v369 = vunpack.c.l.b16 %v296
    %v370 = vunpack.c.l.b16 %v297
    %v371 = vunpack.c.l.b16 %v298
    %v372 = vunpack.c.l.b16 %v299
    %v373 = vunpack.c.l.b16 %v300
    %v374 = vunpack.c.l.b16 %v301
    %v375 = vunpack.c.l.b16 %v302
    %v376 = vunpack.c.l.b16 %v303
    %v377 = vunpack.c.l.b16 %v304
    %v378 = vunpack.c.l.b16 %v305
    %v379 = vunpack.c.l.b16 %v306
    %v380 = vunpack.c.l.b16 %v307
    %v381 = vunpack.c.l.b16 %v308
    %v382 = vunpack.c.l.b16 %v309
    %v383 = vunpack.c.l.b16 %v310
    %v384 = vunpack.c.l.b16 %v311
    %v385 = vunpack.c.l.b16 %v312
    %v386 = vunpack.c.l.b16 %v313
    %v387 = vunpack.c.l.b16 %v314
    %v388 = vunpack.c.l.b16 %v315
    %v389 = vunpack.c.l.b16 %v316
    %v390 = vpack.c.b16 %v359, %v358
    %v391 = vpack.c.b16 %v361, %v360
    %v392 = vpack.c.b16 %v363, %v362
    %v393 = vpack.c.b16 %v365, %v364
    %v394 = vpack.c.b16 %v367, %v366
    %v395 = vpack.c.b16 %v369, %v368
    %v396 = vpack.c.b16 %v371, %v370
    %v397 = vpack.c.b16 %v373, %v372
    %v398 = vpack.c.b16 %v375, %v374
    %v399 = vpack.c.b16 %v377, %v376
    %v400 = vpack.c.b16 %v379, %v378
    %v401 = vpack.c.b16 %v381, %v380
    %v402 = vpack.c.b16 %v383, %v382
    %v403 = vpack.c.b16 %v385, %v384
    %v404 = vpack.c.b16 %v387, %v386
    %v405 = vpack.c.b16 %v389, %v388
    %422 = vmatprep.subr.bf16.mxu0 0
    %423 = vmatpush1.bf16.msra.mxu0 %v390
    %424 = vmatprep.subr.bf16.mxu0 0
    %425 = vmatpush1.bf16.msra.mxu0 %v391
    %426 = vmatprep.subr.bf16.mxu0 0
    %427 = vmatpush1.bf16.msra.mxu0 %v392
    %428 = vmatprep.subr.bf16.mxu0 0
    %429 = vmatpush1.bf16.msra.mxu0 %v393
    %430 = vmatprep.subr.bf16.mxu0 0
    %431 = vmatpush1.bf16.msra.mxu0 %v394
    %432 = vmatprep.subr.bf16.mxu0 0
    %433 = vmatpush1.bf16.msra.mxu0 %v395
    %434 = vmatprep.subr.bf16.mxu0 0
    %435 = vmatpush1.bf16.msra.mxu0 %v396
    %436 = vmatprep.subr.bf16.mxu0 0
    %437 = vmatpush1.bf16.msra.mxu0 %v397
    %438 = vmatprep.subr.bf16.mxu0 0
    %439 = vmatpush1.bf16.msra.mxu0 %v398
    %440 = vmatprep.subr.bf16.mxu0 0
    %441 = vmatpush1.bf16.msra.mxu0 %v399
    %442 = vmatprep.subr.bf16.mxu0 0
    %443 = vmatpush1.bf16.msra.mxu0 %v400
    %444 = vmatprep.subr.bf16.mxu0 0
    %445 = vmatpush1.bf16.msra.mxu0 %v401
    %446 = vmatprep.subr.bf16.mxu0 0
    %447 = vmatpush1.bf16.msra.mxu0 %v402
    %448 = vmatprep.subr.bf16.mxu0 0
    %449 = vmatpush1.bf16.msra.mxu0 %v403
    %450 = vmatprep.subr.bf16.mxu0 0
    %451 = vmatpush1.bf16.msra.mxu0 %v404
    %452 = vmatprep.subr.bf16.mxu0 0
    %453 = vmatpush1.bf16.msra.mxu0 %v405
    %454 = vmatprep.mubr.bf16.mxu0 %v318
    %455 = vmatmul.mubr.bf16.gmra.mrb[0].mxu0 %v317
    %v456 = vpop.f32.mrb[0].mxu0
    %v457 = vadd.f32 %v324, %v456
    %v458 = vpop.f32.mrb[0].mxu0
    %v459 = vpop.f32.mrb[0].mxu0
    %v460 = vadd.f32 %v324, %v459
    %v461 = vpop.f32.mrb[0].mxu0
    %462 = vdwg.mxu0
    %v463 = vmax.f32 %v457, 0.0
    %v464 = vmax.f32 %v460, 0.0
    %v465 = vld [vmem:[#allocation8] sm:$0xf]
    %v466 = vld [vmem:[#allocation8 + $0x4] sm:$0xf]
    %v467 = vld [vmem:[#allocation8 + $0x8] sm:$0xf]
    %v468 = vld [vmem:[#allocation8 + $0xc] sm:$0xf]
    %v469 = vld [vmem:[#allocation8 + $0x10] sm:$0xf]
    %v470 = vld [vmem:[#allocation8 + $0x14] sm:$0xf]
    %v471 = vld [vmem:[#allocation8 + $0x18] sm:$0xf]
    %v472 = vld [vmem:[#allocation8 + $0x1c] sm:$0xf]
    %v473 = vld [vmem:[#allocation8 + $0x20] sm:$0xf]
    %v474 = vld [vmem:[#allocation8 + $0x24] sm:$0xf]
    %v475 = vld [vmem:[#allocation8 + $0x28] sm:$0xf]
    %v476 = vld [vmem:[#allocation8 + $0x2c] sm:$0xf]
    %v477 = vld [vmem:[#allocation8 + $0x30] sm:$0xf]
    %v478 = vld [vmem:[#allocation8 + $0x34] sm:$0xf]
    %v479 = vld [vmem:[#allocation8 + $0x38] sm:$0xf]
    %v480 = vld [vmem:[#allocation8 + $0x3c] sm:$0xf]
    %v481 = vpack.c.bf16 %v464, %v463
    %v482 = vld [vmem:[%s6] sm:$0x1]
    %v484 = vlaneseq
    %v485 = vshrl.u32 %v484, 7
    %v486 = vsub.s32 0, %v485
    %v487 = vrot.slane %v482, %v486
    %v505 = vunpack.c.l.b16 %v465
    %v506 = vunpack.c.l.b16 %v466
    %v507 = vunpack.c.l.b16 %v467
    %v508 = vunpack.c.l.b16 %v468
    %v509 = vunpack.c.l.b16 %v469
    %v510 = vunpack.c.l.b16 %v470
    %v511 = vunpack.c.l.b16 %v471
    %v512 = vunpack.c.l.b16 %v472
    %v513 = vunpack.c.l.b16 %v473
    %v514 = vunpack.c.l.b16 %v474
    %v515 = vunpack.c.l.b16 %v475
    %v516 = vunpack.c.l.b16 %v476
    %v517 = vunpack.c.l.b16 %v477
    %v518 = vunpack.c.l.b16 %v478
    %v519 = vunpack.c.l.b16 %v479
    %v520 = vunpack.c.l.b16 %v480
    %v521 = vpack.c.b16 %v506, %v505
    %v522 = vpack.c.b16 %v508, %v507
    %v523 = vpack.c.b16 %v510, %v509
    %v524 = vpack.c.b16 %v512, %v511
    %v525 = vpack.c.b16 %v514, %v513
    %v526 = vpack.c.b16 %v516, %v515
    %v527 = vpack.c.b16 %v518, %v517
    %v528 = vpack.c.b16 %v520, %v519
    %537 = vmatprep.subr.bf16.mxu0 0
    %538 = vmatpush1.bf16.msra.mxu0 %v521
    %539 = vmatprep.subr.bf16.mxu0 0
    %540 = vmatpush1.bf16.msra.mxu0 %v522
    %541 = vmatprep.subr.bf16.mxu0 0
    %542 = vmatpush1.bf16.msra.mxu0 %v523
    %543 = vmatprep.subr.bf16.mxu0 0
    %544 = vmatpush1.bf16.msra.mxu0 %v524
    %545 = vmatprep.subr.bf16.mxu0 0
    %546 = vmatpush1.bf16.msra.mxu0 %v525
    %547 = vmatprep.subr.bf16.mxu0 0
    %548 = vmatpush1.bf16.msra.mxu0 %v526
    %549 = vmatprep.subr.bf16.mxu0 0
    %550 = vmatpush1.bf16.msra.mxu0 %v527
    %551 = vmatprep.subr.bf16.mxu0 0
    %552 = vmatpush1.bf16.msra.mxu0 %v528
    %553 = vmatprep.subr.bf16.mxu0 0
    %554 = vmatpush1.bf16.msra.mxu0 0
    %555 = vmatprep.subr.bf16.mxu0 0
    %556 = vmatpush1.bf16.msra.mxu0 0
    %557 = vmatprep.subr.bf16.mxu0 0
    %558 = vmatpush1.bf16.msra.mxu0 0
    %559 = vmatprep.subr.bf16.mxu0 0
    %560 = vmatpush1.bf16.msra.mxu0 0
    %561 = vmatprep.subr.bf16.mxu0 0
    %562 = vmatpush1.bf16.msra.mxu0 0
    %563 = vmatprep.subr.bf16.mxu0 0
    %564 = vmatpush1.bf16.msra.mxu0 0
    %565 = vmatprep.subr.bf16.mxu0 0
    %566 = vmatpush1.bf16.msra.mxu0 0
    %567 = vmatprep.subr.bf16.mxu0 0
    %568 = vmatpush1.bf16.msra.mxu0 0
    %569 = vmatprep.mubr.bf16.mxu0 0
    %570 = vmatmul.mubr.bf16.gmra.mrb[0].mxu0 %v481
    %v571 = vpop.f32.mrb[0].mxu0
    %v572 = vadd.f32 %v487, %v571
    %v573 = vpop.f32.mrb[0].mxu0
    %v574 = vpop.f32.mrb[0].mxu0
    %v575 = vadd.f32 %v487, %v574
    %v576 = vpop.f32.mrb[0].mxu0
    %577 = vdwg.mxu0
    %v578 = vmax.f32 %v572, 0.0
    %v579 = vmax.f32 %v575, 0.0
    %v580 = vld [vmem:[#allocation10] sm:$0xf]
    %v581 = vld [vmem:[#allocation10 + $0x4] sm:$0xf]
    %v582 = vld [vmem:[#allocation10 + $0x8] sm:$0xf]
    %v583 = vld [vmem:[#allocation10 + $0xc] sm:$0xf]
    %v584 = vld [vmem:[#allocation10 + $0x10] sm:$0xf]
    %v585 = vld [vmem:[#allocation10 + $0x14] sm:$0xf]
    %v586 = vld [vmem:[#allocation10 + $0x18] sm:$0xf]
    %v587 = vld [vmem:[#allocation10 + $0x1c] sm:$0xf]
    %v588 = vld [vmem:[#allocation10 + $0x20] sm:$0xf]
    %v589 = vld [vmem:[#allocation10 + $0x24] sm:$0xf]
    %v590 = vld [vmem:[#allocation10 + $0x28] sm:$0xf]
    %v591 = vld [vmem:[#allocation10 + $0x2c] sm:$0xf]
    %v592 = vld [vmem:[#allocation10 + $0x30] sm:$0xf]
    %v593 = vld [vmem:[#allocation10 + $0x34] sm:$0xf]
    %v594 = vld [vmem:[#allocation10 + $0x38] sm:$0xf]
    %v595 = vld [vmem:[#allocation10 + $0x3c] sm:$0xf]
    %v596 = vpack.c.bf16 %v579, %v578
    %v597 = vld [vmem:[%s8] sm:$0x1]
    %v599 = vlaneseq
    %v600 = vshrl.u32 %v599, 7
    %v601 = vsub.s32 0, %v600
    %v602 = vrot.slane %v597, %v601
    %v620 = vunpack.c.l.b16 %v580
    %v621 = vunpack.c.l.b16 %v581
    %v622 = vunpack.c.l.b16 %v582
    %v623 = vunpack.c.l.b16 %v583
    %v624 = vunpack.c.l.b16 %v584
    %v625 = vunpack.c.l.b16 %v585
    %v626 = vunpack.c.l.b16 %v586
    %v627 = vunpack.c.l.b16 %v587
    %v628 = vunpack.c.l.b16 %v588
    %v629 = vunpack.c.l.b16 %v589
    %v630 = vunpack.c.l.b16 %v590
    %v631 = vunpack.c.l.b16 %v591
    %v632 = vunpack.c.l.b16 %v592
    %v633 = vunpack.c.l.b16 %v593
    %v634 = vunpack.c.l.b16 %v594
    %v635 = vunpack.c.l.b16 %v595
    %v636 = vpack.c.b16 %v621, %v620
    %v637 = vpack.c.b16 %v623, %v622
    %v638 = vpack.c.b16 %v625, %v624
    %v639 = vpack.c.b16 %v627, %v626
    %v640 = vpack.c.b16 %v629, %v628
    %v641 = vpack.c.b16 %v631, %v630
    %v642 = vpack.c.b16 %v633, %v632
    %v643 = vpack.c.b16 %v635, %v634
    %652 = vmatprep.subr.bf16.mxu0 0
    %653 = vmatpush1.bf16.msra.mxu0 %v636
    %654 = vmatprep.subr.bf16.mxu0 0
    %655 = vmatpush1.bf16.msra.mxu0 %v637
    %656 = vmatprep.subr.bf16.mxu0 0
    %657 = vmatpush1.bf16.msra.mxu0 %v638
    %658 = vmatprep.subr.bf16.mxu0 0
    %659 = vmatpush1.bf16.msra.mxu0 %v639
    %660 = vmatprep.subr.bf16.mxu0 0
    %661 = vmatpush1.bf16.msra.mxu0 %v640
    %662 = vmatprep.subr.bf16.mxu0 0
    %663 = vmatpush1.bf16.msra.mxu0 %v641
    %664 = vmatprep.subr.bf16.mxu0 0
    %665 = vmatpush1.bf16.msra.mxu0 %v642
    %666 = vmatprep.subr.bf16.mxu0 0
    %667 = vmatpush1.bf16.msra.mxu0 %v643
    %668 = vmatprep.subr.bf16.mxu0 0
    %669 = vmatpush1.bf16.msra.mxu0 0
    %670 = vmatprep.subr.bf16.mxu0 0
    %671 = vmatpush1.bf16.msra.mxu0 0
    %672 = vmatprep.subr.bf16.mxu0 0
    %673 = vmatpush1.bf16.msra.mxu0 0
    %674 = vmatprep.subr.bf16.mxu0 0
    %675 = vmatpush1.bf16.msra.mxu0 0
    %676 = vmatprep.subr.bf16.mxu0 0
    %677 = vmatpush1.bf16.msra.mxu0 0
    %678 = vmatprep.subr.bf16.mxu0 0
    %679 = vmatpush1.bf16.msra.mxu0 0
    %680 = vmatprep.subr.bf16.mxu0 0
    %681 = vmatpush1.bf16.msra.mxu0 0
    %682 = vmatprep.subr.bf16.mxu0 0
    %683 = vmatpush1.bf16.msra.mxu0 0
    %684 = vmatprep.mubr.bf16.mxu0 0
    %685 = vmatmul.mubr.bf16.gmra.mrb[0].mxu0 %v596
    %v686 = vpop.f32.mrb[0].mxu0
    %v687 = vadd.f32 %v602, %v686
    %v688 = vpop.f32.mrb[0].mxu0
    %v689 = vpop.f32.mrb[0].mxu0
    %v690 = vadd.f32 %v602, %v689
    %v691 = vpop.f32.mrb[0].mxu0
    %692 = vdwg.mxu0
    %v693 = vmax.f32 %v687, 0.0
    %v694 = vmax.f32 %v690, 0.0
    %v695 = vld [vmem:[#allocation11] sm:$0xf]
    %v696 = vld [vmem:[#allocation11 + $0x4] sm:$0xf]
    %v697 = vld [vmem:[#allocation11 + $0x8] sm:$0xf]
    %v698 = vld [vmem:[#allocation11 + $0xc] sm:$0xf]
    %v699 = vld [vmem:[#allocation11 + $0x10] sm:$0xf]
    %v700 = vld [vmem:[#allocation11 + $0x14] sm:$0xf]
    %v701 = vld [vmem:[#allocation11 + $0x18] sm:$0xf]
    %v702 = vld [vmem:[#allocation11 + $0x1c] sm:$0xf]
    %v703 = vld [vmem:[#allocation11 + $0x20] sm:$0xf]
    %v704 = vld [vmem:[#allocation11 + $0x24] sm:$0xf]
    %v705 = vld [vmem:[#allocation11 + $0x28] sm:$0xf]
    %v706 = vld [vmem:[#allocation11 + $0x2c] sm:$0xf]
    %v707 = vld [vmem:[#allocation11 + $0x30] sm:$0xf]
    %v708 = vld [vmem:[#allocation11 + $0x34] sm:$0xf]
    %v709 = vld [vmem:[#allocation11 + $0x38] sm:$0xf]
    %v710 = vld [vmem:[#allocation11 + $0x3c] sm:$0xf]
    %v711 = vpack.c.bf16 %v694, %v693
    %v712 = vld [vmem:[%s10] sm:$0x1]
    %v714 = vlaneseq
    %v715 = vshrl.u32 %v714, 7
    %v716 = vsub.s32 0, %v715
    %v717 = vrot.slane %v712, %v716
    %v735 = vunpack.c.l.b16 %v695
    %v736 = vunpack.c.l.b16 %v696
    %v737 = vunpack.c.l.b16 %v697
    %v738 = vunpack.c.l.b16 %v698
    %v739 = vunpack.c.l.b16 %v699
    %v740 = vunpack.c.l.b16 %v700
    %v741 = vunpack.c.l.b16 %v701
    %v742 = vunpack.c.l.b16 %v702
    %v743 = vunpack.c.l.b16 %v703
    %v744 = vunpack.c.l.b16 %v704
    %v745 = vunpack.c.l.b16 %v705
    %v746 = vunpack.c.l.b16 %v706
    %v747 = vunpack.c.l.b16 %v707
    %v748 = vunpack.c.l.b16 %v708
    %v749 = vunpack.c.l.b16 %v709
    %v750 = vunpack.c.l.b16 %v710
    %v751 = vpack.c.b16 %v736, %v735
    %v752 = vpack.c.b16 %v738, %v737
    %v753 = vpack.c.b16 %v740, %v739
    %v754 = vpack.c.b16 %v742, %v741
    %v755 = vpack.c.b16 %v744, %v743
    %v756 = vpack.c.b16 %v746, %v745
    %v757 = vpack.c.b16 %v748, %v747
    %v758 = vpack.c.b16 %v750, %v749
    %767 = vmatprep.subr.bf16.mxu0 0
    %768 = vmatpush1.bf16.msra.mxu0 %v751
    %769 = vmatprep.subr.bf16.mxu0 0
    %770 = vmatpush1.bf16.msra.mxu0 %v752
    %771 = vmatprep.subr.bf16.mxu0 0
    %772 = vmatpush1.bf16.msra.mxu0 %v753
    %773 = vmatprep.subr.bf16.mxu0 0
    %774 = vmatpush1.bf16.msra.mxu0 %v754
    %775 = vmatprep.subr.bf16.mxu0 0
    %776 = vmatpush1.bf16.msra.mxu0 %v755
    %777 = vmatprep.subr.bf16.mxu0 0
    %778 = vmatpush1.bf16.msra.mxu0 %v756
    %779 = vmatprep.subr.bf16.mxu0 0
    %780 = vmatpush1.bf16.msra.mxu0 %v757
    %781 = vmatprep.subr.bf16.mxu0 0
    %782 = vmatpush1.bf16.msra.mxu0 %v758
    %783 = vmatprep.subr.bf16.mxu0 0
    %784 = vmatpush1.bf16.msra.mxu0 0
    %785 = vmatprep.subr.bf16.mxu0 0
    %786 = vmatpush1.bf16.msra.mxu0 0
    %787 = vmatprep.subr.bf16.mxu0 0
    %788 = vmatpush1.bf16.msra.mxu0 0
    %789 = vmatprep.subr.bf16.mxu0 0
    %790 = vmatpush1.bf16.msra.mxu0 0
    %791 = vmatprep.subr.bf16.mxu0 0
    %792 = vmatpush1.bf16.msra.mxu0 0
    %793 = vmatprep.subr.bf16.mxu0 0
    %794 = vmatpush1.bf16.msra.mxu0 0
    %795 = vmatprep.subr.bf16.mxu0 0
    %796 = vmatpush1.bf16.msra.mxu0 0
    %797 = vmatprep.subr.bf16.mxu0 0
    %798 = vmatpush1.bf16.msra.mxu0 0
    %799 = vmatprep.mubr.bf16.mxu0 0
    %800 = vmatmul.mubr.bf16.gmra.mrb[0].mxu0 %v711
    %v801 = vpop.f32.mrb[0].mxu0
    %v802 = vadd.f32 %v717, %v801
    %v803 = vpop.f32.mrb[0].mxu0
    %v804 = vpop.f32.mrb[0].mxu0
    %v805 = vadd.f32 %v717, %v804
    %v806 = vpop.f32.mrb[0].mxu0
    %807 = vdwg.mxu0
    %v808 = vsub.f32 0.0, %v802
    %v809 = vsub.f32 0.0, %v805
    %v810 = vmul.f32 %v808, 1.442695
    %v811 = vpow.pop %v810
    %v812 = vmul.f32 %v809, 1.442695
    %v813 = vpow.pop %v812
    %v814 = vadd.f32 %v811, 1.0
    %v815 = vadd.f32 %v813, 1.0
    %v816 = vrcp.pop %v814
    %v817 = vrcp.pop %v815
    %818 = vst [vmem:[#allocation13] sm:$0xff] %v816
    %819 = vst [vmem:[#allocation13 + $0x8] sm:$0xff] %v817
    // Predicated region
    $region70: #{tpu_custom_call.1} parent=1 // pred_check
      _
    $region71: #{tpu_custom_call.1} parent=1 // pred_check_branch
      %821 = sbr.rel (0) target = $region73
    $region72: #{tpu_custom_call.1} parent=1 // pred_region
      %s823 = ssub.s32 256, 256
      %824 = vsyncadd [#allocation4], %s823
      %s825 = sshll.u32 [#allocation13], 4
      %s826 = int_to_ptr.vmem [resolvable:$true] %s825
      %831 = dma.vmem_to_hbm [thread:$0]  %s826, 256, %s11, [#allocation4], 128, 128, 8
    $region73: #{tpu_custom_call.1} parent=1 // pred_fallthru
      _
    // Predicated region
    $region74: #{tpu_custom_call.1} parent=1 // pred_check
      _
    $region75: #{tpu_custom_call.1} parent=1 // pred_check_branch
      %833 = sbr.rel (0) target = $region77
    $region76: #{tpu_custom_call.1} parent=1 // pred_region
      %834 = dma.done [#allocation4], 256
    $region77: #{tpu_custom_call.1} parent=1 // pred_fallthru
      _
    %835 = vsyncpa [#allocation3], 1
    %836 = vsyncpa [#allocation6], 1
    %837 = vsyncpa [#allocation9], 1
    %838 = vsyncpa [#allocation12], 1
    %839 = vsyncpa [#allocation4], 1

</llo_original>
